<compile_context>
chip_gen: v6e
topology: v6e:2x2x1
jax: 0.10.0
libtpu: 0.0.40
codegen_flags: <defaults>
</compile_context>

<pallas_src>
import functools

import jax
import jax.numpy as jnp
from jax import lax
from jax.experimental import pallas as pl
from jax.experimental.pallas import tpu as pltpu


def _round_up(x, m):
    return (x + m - 1) // m * m


def _pick_batch_tile(n, per_image_block_bytes, *, vmem_budget=2 << 20, max_tile=8):
    """Largest divisor of n that (a) keeps double-buffered blocks within budget
    and (b) leaves at least 2 grid steps so 'parallel' can feed both TensorCores
    on v7x-style megacore parts."""
    best = 1
    for cand in range(1, min(n, max_tile) + 1):
        if n % cand:
            continue
        if cand * per_image_block_bytes > vmem_budget:
            continue
        if n >= 2 and n // cand < 2:
            continue
        best = cand
    return best


# -----------------------------------------------------------------------------
# Fast path: stride == (1, 1) and output spatial == input spatial ("same" conv).
# -----------------------------------------------------------------------------
def _sepconv_same_kernel(x_ref, wdw_ref, wpw_ref, o_ref, *,
                         kh_size, kw_size, pad_h, pad_w, height, width,
                         batch_tile):
    """x_ref   : (Bt, Cin, H*W)   flattened NCHW input tile
       wdw_ref : (Cin, KH*KW)     depthwise weights
       wpw_ref : (Cout, Cin)      pointwise weights (already transposed)
       o_ref   : (Bt, Cout, H*W)  flattened NCHW output tile (lane-dense)"""
    cin = x_ref.shape[1]
    s = height * width
    lane_pad = pad_h * width + pad_w          # covers the largest |lane shift|

    w_all = wdw_ref[...].astype(jnp.float32)  # (Cin, KH*KW)
    # Column index of every flattened spatial position (for masking taps that
    # would read across a row boundary).
    col = lax.broadcasted_iota(jnp.int32, (1, s), 1) % width

    dw_parts = []
    for b in range(batch_tile):
        xb = x_ref[b].astype(jnp.float32)                      # (Cin, S)
        if lane_pad > 0:
            zpad = jnp.zeros((cin, lane_pad), jnp.float32)
            xb_pad = jnp.concatenate([zpad, xb, zpad], axis=1)  # (Cin, S + 2P)
        else:
            xb_pad = xb

        acc = jnp.zeros((cin, s), jnp.float32)
        for i_kh in range(kh_size):
            for i_kw in range(kw_size):
                dy = i_kh - pad_h
                dx = i_kw - pad_w
                start = lane_pad + dy * width + dx             # always >= 0
                win = xb_pad[:, start:start + s]               # pure lane shift
                if dx != 0:
                    # Zero the positions whose source column is out of the image
                    # (the vertical out-of-bounds taps already hit the zero pad).
                    valid = jnp.logical_and(col + dx >= 0, col + dx < width)
                    win = jnp.where(valid, win, 0.0)
                tap = i_kh * kw_size + i_kw
                acc = acc + win * w_all[:, tap:tap + 1]
        dw_parts.append(acc)

    dw = dw_parts[0] if batch_tile == 1 else jnp.concatenate(dw_parts, axis=1)
    lhs = wpw_ref[...]                                         # (Cout, Cin)
    rhs = dw.astype(jnp.bfloat16) if lhs.dtype == jnp.bfloat16 else dw
    out_t = jnp.dot(lhs, rhs, preferred_element_type=jnp.float32)  # (Cout, Bt*S)
    for b in range(batch_tile):
        o_ref[b] = out_t[:, b * s:(b + 1) * s].astype(o_ref.dtype)


def _sepconv_same(x, w_dw, wpw_t, *, kh, kw, ph, pw):
    n, cin, h, w = x.shape
    cout = wpw_t.shape[0]
    s = h * w
    itemsize = jnp.dtype(x.dtype).itemsize

    x_flat = x.reshape(n, cin, s)              # free: collapses trailing dims
    wdw2 = w_dw.reshape(cin, kh * kw)          # (Cin,1,KH,KW) -> (Cin, KH*KW)

    # Per-image VMEM block footprint (with (8,128) padding, double buffered).
    per_img = 2 * (_round_up(cin, 8) + _round_up(cout, 8)) * _round_up(s, 128) * itemsize
    bt = _pick_batch_tile(n, per_img)
    grid = (n // bt,)

    kernel = functools.partial(
        _sepconv_same_kernel,
        kh_size=kh, kw_size=kw, pad_h=ph, pad_w=pw,
        height=h, width=w, batch_tile=bt)

    flops = 2 * n * s * cin * (kh * kw + cout)
    bytes_accessed = (x.size + w_dw.size + wpw_t.size + n * cout * s) * itemsize

    out_flat = pl.pallas_call(
        kernel,
        out_shape=jax.ShapeDtypeStruct((n, cout, s), x.dtype),
        grid_spec=pltpu.PrefetchScalarGridSpec(
            num_scalar_prefetch=0,
            grid=grid,
            in_specs=[
                pl.BlockSpec((bt, cin, s), lambda i: (i, 0, 0)),
                pl.BlockSpec((cin, kh * kw), lambda i: (0, 0)),
                pl.BlockSpec((cout, cin), lambda i: (0, 0)),
            ],
            out_specs=pl.BlockSpec((bt, cout, s), lambda i: (i, 0, 0)),
        ),
        compiler_params=pltpu.CompilerParams(
            dimension_semantics=("parallel",),
            vmem_limit_bytes=32 * 1024 * 1024),
        cost_estimate=pl.CostEstimate(
            flops=flops, transcendentals=0, bytes_accessed=bytes_accessed),
    )(x_flat, wdw2, wpw_t)

    return out_flat.reshape(n, cout, h, w)     # free: splits trailing dim


# -----------------------------------------------------------------------------
# General fallback path: arbitrary stride / padding (one image per grid step).
# -----------------------------------------------------------------------------
def _sepconv_general_kernel(x_ref, wdw_ref, wpw_ref, o_ref, *,
                            kh_size, kw_size, stride_h, stride_w, out_h, out_w):
    """x_ref   : (1, Hp, Wp, Cin)  padded NHWC input tile
       wdw_ref : (KH, KW, Cin)     depthwise weights
       wpw_ref : (Cout, Cin)       pointwise weights (transposed)
       o_ref   : (1, Cout, Ho*Wo)  lane-dense output tile"""
    cin = x_ref.shape[-1]
    acc = jnp.zeros((out_h, out_w, cin), jnp.float32)
    for i_kh in range(kh_size):
        for i_kw in range(kw_size):
            if stride_h == 1 and stride_w == 1:
                win = x_ref[0, pl.ds(i_kh, out_h), pl.ds(i_kw, out_w), :]
            else:
                # TODO(synk): strided sublane/lane reads; a dense load + subsample
                # would keep vld slots fed, but stride>1 is rare for this module.
                win = x_ref[0, pl.ds(i_kh, out_h, stride_h),
                            pl.ds(i_kw, out_w, stride_w), :]
            acc = acc + win.astype(jnp.float32) * wdw_ref[i_kh, i_kw, :].astype(jnp.float32)
    dw_flat = acc.reshape(out_h * out_w, cin)        # keeps last dim -> cheap
    lhs = wpw_ref[...]
    rhs = dw_flat.astype(jnp.bfloat16) if lhs.dtype == jnp.bfloat16 else dw_flat
    out_t = jnp.dot(lhs, rhs.T, preferred_element_type=jnp.float32)  # (Cout, Ho*Wo)
    o_ref[0] = out_t.astype(o_ref.dtype)


def _sepconv_general(x, w_dw, wpw_t, *, kh, kw, sh, sw, ph, pw, out_h, out_w):
    n, cin, h, w = x.shape
    cout = wpw_t.shape[0]
    itemsize = jnp.dtype(x.dtype).itemsize

    x_nhwc = jnp.transpose(x, (0, 2, 3, 1))
    x_pad = jnp.pad(x_nhwc, ((0, 0), (ph, ph), (pw, pw), (0, 0)))
    hp, wp = x_pad.shape[1], x_pad.shape[2]
    wdw_hwc = jnp.transpose(w_dw[:, 0, :, :], (1, 2, 0))       # (KH, KW, Cin)

    kernel = functools.partial(
        _sepconv_general_kernel,
        kh_size=kh, kw_size=kw, stride_h=sh, stride_w=sw,
        out_h=out_h, out_w=out_w)

    flops = 2 * n * out_h * out_w * cin * (kh * kw + cout)
    bytes_accessed = (x.size + w_dw.size + wpw_t.size + n * cout * out_h * out_w) * itemsize

    out_flat = pl.pallas_call(
        kernel,
        out_shape=jax.ShapeDtypeStruct((n, cout, out_h * out_w), x.dtype),
        grid_spec=pltpu.PrefetchScalarGridSpec(
            num_scalar_prefetch=0,
            grid=(n,),
            in_specs=[
                pl.BlockSpec((1, hp, wp, cin), lambda b: (b, 0, 0, 0)),
                pl.BlockSpec((kh, kw, cin), lambda b: (0, 0, 0)),
                pl.BlockSpec((cout, cin), lambda b: (0, 0)),
            ],
            out_specs=pl.BlockSpec((1, cout, out_h * out_w), lambda b: (b, 0, 0)),
        ),
        compiler_params=pltpu.CompilerParams(
            dimension_semantics=("parallel",),
            vmem_limit_bytes=32 * 1024 * 1024),
        cost_estimate=pl.CostEstimate(
            flops=flops, transcendentals=0, bytes_accessed=bytes_accessed),
    )(x_pad, wdw_hwc, wpw_t)

    return out_flat.reshape(n, cout, out_h, out_w)


# -----------------------------------------------------------------------------
# Public entry point (matches PyTorch SeparableConv2d.forward, bias=False).
# -----------------------------------------------------------------------------
def separable_conv2d(x_nchw, w_dw, w_pw, *, stride, padding):
    """x_nchw : (N, Cin, H, W)
       w_dw   : (Cin, 1, KH, KW)   depthwise conv weight (PyTorch layout)
       w_pw   : (Cout, Cin, 1, 1)  pointwise conv weight (PyTorch layout)
       returns (N, Cout, Ho, Wo)"""
    n, cin, h, w = x_nchw.shape
    kh, kw = int(w_dw.shape[2]), int(w_dw.shape[3])
    sh, sw = stride
    ph, pw = padding
    cout = w_pw.shape[0]
    out_h = (h + 2 * ph - kh) // sh + 1
    out_w = (w + 2 * pw - kw) // sw + 1

    wpw_t = w_pw.reshape(cout, cin)            # (Cout, Cin)

    if sh == 1 and sw == 1 and out_h == h and out_w == w:
        return _sepconv_same(x_nchw, w_dw, wpw_t, kh=kh, kw=kw, ph=ph, pw=pw)
    return _sepconv_general(x_nchw, w_dw, wpw_t, kh=kh, kw=kw, sh=sh, sw=sw,
                            ph=ph, pw=pw, out_h=out_h, out_w=out_w)


def _reference(x_nchw, w_dw, w_pw, *, stride, padding):
    """Pure-JAX reference (lax conv) for correctness checking."""
    cin = x_nchw.shape[1]
    ph, pw = padding
    x_nhwc = jnp.transpose(x_nchw, (0, 2, 3, 1))
    wdw_hwio = jnp.transpose(w_dw, (2, 3, 1, 0))               # (KH, KW, 1, Cin)
    dw = lax.conv_general_dilated(
        x_nhwc, wdw_hwio, window_strides=stride,
        padding=[(ph, ph), (pw, pw)],
        dimension_numbers=("NHWC", "HWIO", "NHWC"),
        feature_group_count=cin)
    wpw_hwio = jnp.transpose(w_pw, (2, 3, 1, 0))               # (1, 1, Cin, Cout)
    pwc = lax.conv_general_dilated(
        dw, wpw_hwio, window_strides=(1, 1), padding=[(0, 0), (0, 0)],
        dimension_numbers=("NHWC", "HWIO", "NHWC"))
    return jnp.transpose(pwc, (0, 3, 1, 2))


if __name__ == "__main__":
    # Module config: SeparableConv2d(in_channels=4, out_channels=8,
    #                                kernel_size=(3,3), stride=(1,1),
    #                                padding=(1,1), bias=False)
    N, CIN, H, W = 2, 4, 16, 16
    COUT, KH, KW = 8, 3, 3
    STRIDE, PADDING = (1, 1), (1, 1)

    key = jax.random.PRNGKey(0)
    kx, kdw, kpw = jax.random.split(key, 3)
    x = jax.random.normal(kx, (N, CIN, H, W), dtype=jnp.float32)
    # PyTorch parameter shapes:
    #   conv1.weight:          (CIN, 1, KH, KW)   (depthwise, groups=CIN)
    #   pointwise_conv.weight: (COUT, CIN, 1, 1)
    w_dw = 0.1 * jax.random.normal(kdw, (CIN, 1, KH, KW), dtype=jnp.float32)
    w_pw = 0.1 * jax.random.normal(kpw, (COUT, CIN, 1, 1), dtype=jnp.float32)

    out = separable_conv2d(x, w_dw, w_pw, stride=STRIDE, padding=PADDING)
    out = jax.block_until_ready(out)

    ref = _reference(x, w_dw, w_pw, stride=STRIDE, padding=PADDING)
    assert out.shape == (N, COUT, H, W), out.shape
    assert jnp.allclose(out, ref, atol=1e-5, rtol=1e-5), "mismatch vs reference"

    print("KERNEL_OK")
</pallas_src>

<mosaic_0001>
module attributes {stable_mosaic.version = 11 : i64} {
  func.func @_sepconv_same_kernel(%arg0: i32, %arg1: memref<1x4x256xf32, #tpu.memory_space<vmem>>, %arg2: memref<4x9xf32, #tpu.memory_space<vmem>>, %arg3: memref<8x4xf32, #tpu.memory_space<vmem>>, %arg4: memref<1x8x256xf32, #tpu.memory_space<vmem>>) attributes {dimension_semantics = [#tpu.dimension_semantics<parallel>], iteration_bounds = array<i64: 2>, scalar_prefetch = 0 : i64, scratch_operands = 0 : i64, tpu.core_type = #tpu.core_type<tc>, window_params = [{transform_indices = @transform_0, window_bounds = array<i64: 1, 4, 256>}, {pipeline_mode = #tpu.pipeline_mode<synchronous>, transform_indices = @transform_1, window_bounds = array<i64: 4, 9>}, {pipeline_mode = #tpu.pipeline_mode<synchronous>, transform_indices = @transform_2, window_bounds = array<i64: 8, 4>}, {transform_indices = @transform_3, window_bounds = array<i64: 1, 8, 256>}]} {
    %c0 = arith.constant 0 : index
    %c0_0 = arith.constant 0 : index
    %0 = vector.load %arg2[%c0, %c0_0] : memref<4x9xf32, #tpu.memory_space<vmem>>, vector<4x9xf32>
    %1 = tpu.iota {dimensions = array<i32: 1>} : vector<1x256xi32>
    %c16_i32 = arith.constant 16 : i32
    %c0_i32 = arith.constant 0 : i32
    %2 = arith.cmpi eq, %c16_i32, %c0_i32 : i32
    %c1_i32 = arith.constant 1 : i32
    %3 = arith.select %2, %c1_i32, %c16_i32 : i32
    %4 = vector.broadcast %3 : i32 to vector<1x256xi32>
    %5 = arith.remsi %1, %4 : vector<1x256xi32>
    %c0_i32_1 = arith.constant 0 : i32
    %6 = vector.broadcast %c0_i32_1 : i32 to vector<1x256xi32>
    %7 = arith.cmpi ne, %5, %6 : vector<1x256xi32>
    %c0_i32_2 = arith.constant 0 : i32
    %8 = vector.broadcast %c0_i32_2 : i32 to vector<1x256xi32>
    %9 = arith.cmpi slt, %5, %8 : vector<1x256xi32>
    %c0_i32_3 = arith.constant 0 : i32
    %10 = arith.cmpi slt, %3, %c0_i32_3 : i32
    %11 = vector.broadcast %10 : i1 to vector<1x256xi1>
    %12 = vector.broadcast %11 : vector<1x256xi1> to vector<1x256xi1>
    %13 = arith.xori %9, %12 : vector<1x256xi1>
    %14 = arith.andi %13, %7 : vector<1x256xi1>
    %15 = vector.broadcast %3 : i32 to vector<1x256xi32>
    %16 = arith.addi %5, %15 : vector<1x256xi32>
    %17 = arith.select %14, %16, %5 : vector<1x256xi1>, vector<1x256xi32>
    %c0_4 = arith.constant 0 : index
    %c0_5 = arith.constant 0 : index
    %c0_6 = arith.constant 0 : index
    %18 = vector.load %arg1[%c0_4, %c0_5, %c0_6] : memref<1x4x256xf32, #tpu.memory_space<vmem>>, vector<1x4x256xf32>
    %19 = vector.shape_cast %18 : vector<1x4x256xf32> to vector<4x256xf32>
    %cst = arith.constant 0.000000e+00 : f32
    %20 = vector.broadcast %cst : f32 to vector<4x17xf32>
    %21 = tpu.concatenate %20, %19, %20 in 1 : vector<4x17xf32>, vector<4x256xf32>, vector<4x17xf32> -> vector<4x290xf32>
    %cst_7 = arith.constant 0.000000e+00 : f32
    %22 = vector.broadcast %cst_7 : f32 to vector<4x256xf32>
    %23 = vector.extract_strided_slice %21 {offsets = [0, 0], sizes = [4, 256], strides = [1, 1]} : vector<4x290xf32> to vector<4x256xf32>
    %c-1_i32 = arith.constant -1 : i32
    %24 = vector.broadcast %c-1_i32 : i32 to vector<1x256xi32>
    %25 = arith.addi %17, %24 : vector<1x256xi32>
    %c0_i32_8 = arith.constant 0 : i32
    %26 = vector.broadcast %c0_i32_8 : i32 to vector<1x256xi32>
    %27 = arith.cmpi sge, %25, %26 : vector<1x256xi32>
    %c-1_i32_9 = arith.constant -1 : i32
    %28 = vector.broadcast %c-1_i32_9 : i32 to vector<1x256xi32>
    %29 = arith.addi %17, %28 : vector<1x256xi32>
    %c16_i32_10 = arith.constant 16 : i32
    %30 = vector.broadcast %c16_i32_10 : i32 to vector<1x256xi32>
    %31 = arith.cmpi slt, %29, %30 : vector<1x256xi32>
    %32 = arith.andi %27, %31 : vector<1x256xi1>
    %cst_11 = arith.constant 0.000000e+00 : f32
    %33 = vector.shape_cast %32 : vector<1x256xi1> to vector<1x256xi1>
    %34 = vector.broadcast %33 : vector<1x256xi1> to vector<4x256xi1>
    %35 = vector.broadcast %cst_11 : f32 to vector<4x256xf32>
    %36 = arith.select %34, %23, %35 : vector<4x256xi1>, vector<4x256xf32>
    %37 = vector.extract_strided_slice %0 {offsets = [0, 0], sizes = [4, 1], strides = [1, 1]} : vector<4x9xf32> to vector<4x1xf32>
    %38 = vector.broadcast %37 : vector<4x1xf32> to vector<4x256xf32>
    %39 = arith.mulf %36, %38 : vector<4x256xf32>
    %40 = arith.addf %22, %39 : vector<4x256xf32>
    %41 = vector.extract_strided_slice %21 {offsets = [0, 1], sizes = [4, 256], strides = [1, 1]} : vector<4x290xf32> to vector<4x256xf32>
    %42 = vector.extract_strided_slice %0 {offsets = [0, 1], sizes = [4, 1], strides = [1, 1]} : vector<4x9xf32> to vector<4x1xf32>
    %43 = vector.broadcast %42 : vector<4x1xf32> to vector<4x256xf32>
    %44 = arith.mulf %41, %43 : vector<4x256xf32>
    %45 = arith.addf %40, %44 : vector<4x256xf32>
    %46 = vector.extract_strided_slice %21 {offsets = [0, 2], sizes = [4, 256], strides = [1, 1]} : vector<4x290xf32> to vector<4x256xf32>
    %c1_i32_12 = arith.constant 1 : i32
    %47 = vector.broadcast %c1_i32_12 : i32 to vector<1x256xi32>
    %48 = arith.addi %17, %47 : vector<1x256xi32>
    %c0_i32_13 = arith.constant 0 : i32
    %49 = vector.broadcast %c0_i32_13 : i32 to vector<1x256xi32>
    %50 = arith.cmpi sge, %48, %49 : vector<1x256xi32>
    %c1_i32_14 = arith.constant 1 : i32
    %51 = vector.broadcast %c1_i32_14 : i32 to vector<1x256xi32>
    %52 = arith.addi %17, %51 : vector<1x256xi32>
    %c16_i32_15 = arith.constant 16 : i32
    %53 = vector.broadcast %c16_i32_15 : i32 to vector<1x256xi32>
    %54 = arith.cmpi slt, %52, %53 : vector<1x256xi32>
    %55 = arith.andi %50, %54 : vector<1x256xi1>
    %cst_16 = arith.constant 0.000000e+00 : f32
    %56 = vector.shape_cast %55 : vector<1x256xi1> to vector<1x256xi1>
    %57 = vector.broadcast %56 : vector<1x256xi1> to vector<4x256xi1>
    %58 = vector.broadcast %cst_16 : f32 to vector<4x256xf32>
    %59 = arith.select %57, %46, %58 : vector<4x256xi1>, vector<4x256xf32>
    %60 = vector.extract_strided_slice %0 {offsets = [0, 2], sizes = [4, 1], strides = [1, 1]} : vector<4x9xf32> to vector<4x1xf32>
    %61 = vector.broadcast %60 : vector<4x1xf32> to vector<4x256xf32>
    %62 = arith.mulf %59, %61 : vector<4x256xf32>
    %63 = arith.addf %45, %62 : vector<4x256xf32>
    %64 = vector.extract_strided_slice %21 {offsets = [0, 16], sizes = [4, 256], strides = [1, 1]} : vector<4x290xf32> to vector<4x256xf32>
    %c-1_i32_17 = arith.constant -1 : i32
    %65 = vector.broadcast %c-1_i32_17 : i32 to vector<1x256xi32>
    %66 = arith.addi %17, %65 : vector<1x256xi32>
    %c0_i32_18 = arith.constant 0 : i32
    %67 = vector.broadcast %c0_i32_18 : i32 to vector<1x256xi32>
    %68 = arith.cmpi sge, %66, %67 : vector<1x256xi32>
    %c-1_i32_19 = arith.constant -1 : i32
    %69 = vector.broadcast %c-1_i32_19 : i32 to vector<1x256xi32>
    %70 = arith.addi %17, %69 : vector<1x256xi32>
    %c16_i32_20 = arith.constant 16 : i32
    %71 = vector.broadcast %c16_i32_20 : i32 to vector<1x256xi32>
    %72 = arith.cmpi slt, %70, %71 : vector<1x256xi32>
    %73 = arith.andi %68, %72 : vector<1x256xi1>
    %cst_21 = arith.constant 0.000000e+00 : f32
    %74 = vector.shape_cast %73 : vector<1x256xi1> to vector<1x256xi1>
    %75 = vector.broadcast %74 : vector<1x256xi1> to vector<4x256xi1>
    %76 = vector.broadcast %cst_21 : f32 to vector<4x256xf32>
    %77 = arith.select %75, %64, %76 : vector<4x256xi1>, vector<4x256xf32>
    %78 = vector.extract_strided_slice %0 {offsets = [0, 3], sizes = [4, 1], strides = [1, 1]} : vector<4x9xf32> to vector<4x1xf32>
    %79 = vector.broadcast %78 : vector<4x1xf32> to vector<4x256xf32>
    %80 = arith.mulf %77, %79 : vector<4x256xf32>
    %81 = arith.addf %63, %80 : vector<4x256xf32>
    %82 = vector.extract_strided_slice %21 {offsets = [0, 17], sizes = [4, 256], strides = [1, 1]} : vector<4x290xf32> to vector<4x256xf32>
    %83 = vector.extract_strided_slice %0 {offsets = [0, 4], sizes = [4, 1], strides = [1, 1]} : vector<4x9xf32> to vector<4x1xf32>
    %84 = vector.broadcast %83 : vector<4x1xf32> to vector<4x256xf32>
    %85 = arith.mulf %82, %84 : vector<4x256xf32>
    %86 = arith.addf %81, %85 : vector<4x256xf32>
    %87 = vector.extract_strided_slice %21 {offsets = [0, 18], sizes = [4, 256], strides = [1, 1]} : vector<4x290xf32> to vector<4x256xf32>
    %c1_i32_22 = arith.constant 1 : i32
    %88 = vector.broadcast %c1_i32_22 : i32 to vector<1x256xi32>
    %89 = arith.addi %17, %88 : vector<1x256xi32>
    %c0_i32_23 = arith.constant 0 : i32
    %90 = vector.broadcast %c0_i32_23 : i32 to vector<1x256xi32>
    %91 = arith.cmpi sge, %89, %90 : vector<1x256xi32>
    %c1_i32_24 = arith.constant 1 : i32
    %92 = vector.broadcast %c1_i32_24 : i32 to vector<1x256xi32>
    %93 = arith.addi %17, %92 : vector<1x256xi32>
    %c16_i32_25 = arith.constant 16 : i32
    %94 = vector.broadcast %c16_i32_25 : i32 to vector<1x256xi32>
    %95 = arith.cmpi slt, %93, %94 : vector<1x256xi32>
    %96 = arith.andi %91, %95 : vector<1x256xi1>
    %cst_26 = arith.constant 0.000000e+00 : f32
    %97 = vector.shape_cast %96 : vector<1x256xi1> to vector<1x256xi1>
    %98 = vector.broadcast %97 : vector<1x256xi1> to vector<4x256xi1>
    %99 = vector.broadcast %cst_26 : f32 to vector<4x256xf32>
    %100 = arith.select %98, %87, %99 : vector<4x256xi1>, vector<4x256xf32>
    %101 = vector.extract_strided_slice %0 {offsets = [0, 5], sizes = [4, 1], strides = [1, 1]} : vector<4x9xf32> to vector<4x1xf32>
    %102 = vector.broadcast %101 : vector<4x1xf32> to vector<4x256xf32>
    %103 = arith.mulf %100, %102 : vector<4x256xf32>
    %104 = arith.addf %86, %103 : vector<4x256xf32>
    %105 = vector.extract_strided_slice %21 {offsets = [0, 32], sizes = [4, 256], strides = [1, 1]} : vector<4x290xf32> to vector<4x256xf32>
    %c-1_i32_27 = arith.constant -1 : i32
    %106 = vector.broadcast %c-1_i32_27 : i32 to vector<1x256xi32>
    %107 = arith.addi %17, %106 : vector<1x256xi32>
    %c0_i32_28 = arith.constant 0 : i32
    %108 = vector.broadcast %c0_i32_28 : i32 to vector<1x256xi32>
    %109 = arith.cmpi sge, %107, %108 : vector<1x256xi32>
    %c-1_i32_29 = arith.constant -1 : i32
    %110 = vector.broadcast %c-1_i32_29 : i32 to vector<1x256xi32>
    %111 = arith.addi %17, %110 : vector<1x256xi32>
    %c16_i32_30 = arith.constant 16 : i32
    %112 = vector.broadcast %c16_i32_30 : i32 to vector<1x256xi32>
    %113 = arith.cmpi slt, %111, %112 : vector<1x256xi32>
    %114 = arith.andi %109, %113 : vector<1x256xi1>
    %cst_31 = arith.constant 0.000000e+00 : f32
    %115 = vector.shape_cast %114 : vector<1x256xi1> to vector<1x256xi1>
    %116 = vector.broadcast %115 : vector<1x256xi1> to vector<4x256xi1>
    %117 = vector.broadcast %cst_31 : f32 to vector<4x256xf32>
    %118 = arith.select %116, %105, %117 : vector<4x256xi1>, vector<4x256xf32>
    %119 = vector.extract_strided_slice %0 {offsets = [0, 6], sizes = [4, 1], strides = [1, 1]} : vector<4x9xf32> to vector<4x1xf32>
    %120 = vector.broadcast %119 : vector<4x1xf32> to vector<4x256xf32>
    %121 = arith.mulf %118, %120 : vector<4x256xf32>
    %122 = arith.addf %104, %121 : vector<4x256xf32>
    %123 = vector.extract_strided_slice %21 {offsets = [0, 33], sizes = [4, 256], strides = [1, 1]} : vector<4x290xf32> to vector<4x256xf32>
    %124 = vector.extract_strided_slice %0 {offsets = [0, 7], sizes = [4, 1], strides = [1, 1]} : vector<4x9xf32> to vector<4x1xf32>
    %125 = vector.broadcast %124 : vector<4x1xf32> to vector<4x256xf32>
    %126 = arith.mulf %123, %125 : vector<4x256xf32>
    %127 = arith.addf %122, %126 : vector<4x256xf32>
    %128 = vector.extract_strided_slice %21 {offsets = [0, 34], sizes = [4, 256], strides = [1, 1]} : vector<4x290xf32> to vector<4x256xf32>
    %c1_i32_32 = arith.constant 1 : i32
    %129 = vector.broadcast %c1_i32_32 : i32 to vector<1x256xi32>
    %130 = arith.addi %17, %129 : vector<1x256xi32>
    %c0_i32_33 = arith.constant 0 : i32
    %131 = vector.broadcast %c0_i32_33 : i32 to vector<1x256xi32>
    %132 = arith.cmpi sge, %130, %131 : vector<1x256xi32>
    %c1_i32_34 = arith.constant 1 : i32
    %133 = vector.broadcast %c1_i32_34 : i32 to vector<1x256xi32>
    %134 = arith.addi %17, %133 : vector<1x256xi32>
    %c16_i32_35 = arith.constant 16 : i32
    %135 = vector.broadcast %c16_i32_35 : i32 to vector<1x256xi32>
    %136 = arith.cmpi slt, %134, %135 : vector<1x256xi32>
    %137 = arith.andi %132, %136 : vector<1x256xi1>
    %cst_36 = arith.constant 0.000000e+00 : f32
    %138 = vector.shape_cast %137 : vector<1x256xi1> to vector<1x256xi1>
    %139 = vector.broadcast %138 : vector<1x256xi1> to vector<4x256xi1>
    %140 = vector.broadcast %cst_36 : f32 to vector<4x256xf32>
    %141 = arith.select %139, %128, %140 : vector<4x256xi1>, vector<4x256xf32>
    %142 = vector.extract_strided_slice %0 {offsets = [0, 8], sizes = [4, 1], strides = [1, 1]} : vector<4x9xf32> to vector<4x1xf32>
    %143 = vector.broadcast %142 : vector<4x1xf32> to vector<4x256xf32>
    %144 = arith.mulf %141, %143 : vector<4x256xf32>
    %145 = arith.addf %127, %144 : vector<4x256xf32>
    %c0_37 = arith.constant 0 : index
    %c0_38 = arith.constant 0 : index
    %146 = vector.load %arg3[%c0_37, %c0_38] : memref<8x4xf32, #tpu.memory_space<vmem>>, vector<8x4xf32>
    %cst_39 = arith.constant dense<0.000000e+00> : vector<8x256xf32>
    %147 = tpu.matmul %146, %145, %cst_39 {dimension_numbers = #tpu.dot_dimension_numbers<[1], [0], [0], [1], [0, 0, 1, 1], [], []>} : vector<8x4xf32>, vector<4x256xf32>, vector<8x256xf32> -> vector<8x256xf32>
    %c0_40 = arith.constant 0 : index
    %c0_41 = arith.constant 0 : index
    %c0_42 = arith.constant 0 : index
    %148 = vector.load %arg4[%c0_40, %c0_41, %c0_42] : memref<1x8x256xf32, #tpu.memory_space<vmem>>, vector<1x8x256xf32>
    %149 = vector.shape_cast %148 : vector<1x8x256xf32> to vector<8x256xf32>
    %150 = vector.shape_cast %147 : vector<8x256xf32> to vector<1x8x256xf32>
    tpu.vector_store %arg4[%c0_40, %c0_41, %c0_42], %150 {strides = array<i32>} : memref<1x8x256xf32, #tpu.memory_space<vmem>>, vector<1x8x256xf32>,
    return
  }
  func.func @transform_0(%arg0: i32) -> (i32, i32, i32) {
    %c0_i32 = arith.constant 0 : i32
    %c0_i32_0 = arith.constant 0 : i32
    %c0_i32_1 = arith.constant 0 : i32
    return %arg0, %c0_i32, %c0_i32_0 : i32, i32, i32
  }
  func.func @transform_1(%arg0: i32) -> (i32, i32) {
    %c0_i32 = arith.constant 0 : i32
    %c0_i32_0 = arith.constant 0 : i32
    %c0_i32_1 = arith.constant 0 : i32
    return %c0_i32, %c0_i32_0 : i32, i32
  }
  func.func @transform_2(%arg0: i32) -> (i32, i32) {
    %c0_i32 = arith.constant 0 : i32
    %c0_i32_0 = arith.constant 0 : i32
    %c0_i32_1 = arith.constant 0 : i32
    return %c0_i32, %c0_i32_0 : i32, i32
  }
  func.func @transform_3(%arg0: i32) -> (i32, i32, i32) {
    %c0_i32 = arith.constant 0 : i32
    %c0_i32_0 = arith.constant 0 : i32
    %c0_i32_1 = arith.constant 0 : i32
    return %arg0, %c0_i32, %c0_i32_0 : i32, i32, i32
  }
}

</mosaic_0001>

<llo_original>
// kernel: tpu_custom_call.1
$region0: #{tpu_custom_call.1}
  #allocation0 [shape = 'u32[]', space=smem, size = 0x4, offset = 0x4, fixed_abs, tag = 'smem constant byte address 0x4 - core index']
  #allocation1 [shape = 'u32[144,128]{1,0:T(1,128)}', space=vmem, size = 0x12000, scoped, tag = 'internal scratch']
  %s0 = inlined_call_operand.hbm [shape: f32[2,4,256], index: 0, kind: input, shape index: {}]
  %s1 = inlined_call_operand.vmem [shape: f32[4,9], index: 1, kind: input, shape index: {}]
  %s2 = inlined_call_operand.vmem [shape: f32[8,4], index: 2, kind: input, shape index: {}]
  %s3 = inlined_call_operand.hbm [shape: f32[2,8,256], index: 3, kind: output, shape index: {}]
  %s4 = sld [smem:[#allocation0]]
  $region49: #{tpu_custom_call.1} parent=0
    _
  %s6 = ssub.s32 1, %s4
  %s7 = scalar_select 0, %s6, %s4
  $region1: #{tpu_custom_call.1} parent=0
    #allocation2 [shape = 'u8[8192]{0}', space=vmem, size = 0x2000, scoped, tag = 'input window, operand 0']
    #allocation3 [shape = 's32[2]{0}', space=sflag, size = 0x8, scoped, tag = 'scoped memory for tpu_custom_call.1']
    #allocation4 [shape = 's32[2]{0}', space=sflag, size = 0x8, scoped, tag = 'scoped memory for tpu_custom_call.1']
    #allocation5 [shape = 'u8[16384]{0}', space=vmem, size = 0x4000, scoped, tag = 'output window, operand 0']
    %8 = vsyncpa [#allocation3], 0
    %s9 = scalar_lea.sflag [#allocation3], 1
    %10 = vsyncpa %s9, 0
    %11 = vsyncpa [#allocation4], 0
    %s12 = scalar_lea.sflag [#allocation4], 1
    %13 = vsyncpa %s12, 0
    loop: start=0, step=1, limit=4
    $region2: #{tpu_custom_call.1} parent=1 // loop_pre_header
      _
    $region3: #{tpu_custom_call.1} parent=1 // loop_header
      %s15 = sphi 0, %s19
      %p16 = scmp.ge.s32.totalorder %s15, 4
      %s25 = sphi 0, %s27
      %s28 = sphi 0, %s25
      %s29 = sphi 0, %s28
      %s45 = sphi 0, %s29
      %s49 = sphi 0, %s49
      %s51 = sphi 0, %s49
      %s52 = sphi 0, %s51
      %s66 = sphi 0, %s52
      %s70 = sphi 0, %s70
      %s72 = sphi 0, %s70
      %s73 = sphi 0, %s72
      %s87 = sphi 0, %s73
      %s93 = sphi 0, %s95
      %s96 = sphi 0, %s93
      %s97 = sphi 0, %s96
      %s113 = sphi 0, %s97
    $region4: #{tpu_custom_call.1} parent=1 // loop_header_branch
      %18 = sbr.rel (%p16) target = $region8
    $region5: #{tpu_custom_call.1} parent=1 // loop_body
      %s20 = ssub.s32 %s15, 1
      %s21 = ssub.s32 %s15, 2
      %s22 = sadd.s32 %s15, 1
      %s23 = ssub.s32 %s15, %s22
      %p24 = scmp.eq.s32.totalorder %s23, 0
      %s26 = sadd.s32 %s25, 1
      %s27 = scalar_select %p24, %s25, %s26
      %p30 = pneg %p24
      %p31 = scmp.eq.s32.totalorder %s15, 1
      %p32 = por %p30, %p31
      %p33 = scmp.ne.s32.totalorder %s25, %s28
      %p34 = scmp.eq.s32.totalorder %s15, 0
      %p35 = por %p33, %p34
      %p36 = scmp.ne.s32.totalorder %s25, %s28
      %p37 = scmp.eq.s32.totalorder %s20, 1
      %p38 = por %p36, %p37
      %p39 = scmp.ne.s32.totalorder %s28, %s29
      %p40 = scmp.eq.s32.totalorder %s20, 0
      %p41 = por %p39, %p40
      %p42 = scmp.ne.s32.totalorder %s28, %s29
      %p43 = scmp.eq.s32.totalorder %s21, 1
      %p44 = por %p42, %p43
      %p46 = scmp.ne.s32.totalorder %s29, %s45
      %p47 = scmp.eq.s32.totalorder %s21, 0
      %p48 = por %p46, %p47
      %s50 = sadd.s32 %s49, 1
      %p53 = scmp.eq.s32.totalorder %s15, 1
      %p54 = scmp.ne.s32.totalorder %s49, %s51
      %p55 = scmp.eq.s32.totalorder %s15, 0
      %p56 = por %p54, %p55
      %p57 = scmp.ne.s32.totalorder %s49, %s51
      %p58 = scmp.eq.s32.totalorder %s20, 1
      %p59 = por %p57, %p58
      %p60 = scmp.ne.s32.totalorder %s51, %s52
      %p61 = scmp.eq.s32.totalorder %s20, 0
      %p62 = por %p60, %p61
      %p63 = scmp.ne.s32.totalorder %s51, %s52
      %p64 = scmp.eq.s32.totalorder %s21, 1
      %p65 = por %p63, %p64
      %p67 = scmp.ne.s32.totalorder %s52, %s66
      %p68 = scmp.eq.s32.totalorder %s21, 0
      %p69 = por %p67, %p68
      %s71 = sadd.s32 %s70, 1
      %p74 = scmp.eq.s32.totalorder %s15, 1
      %p75 = scmp.ne.s32.totalorder %s70, %s72
      %p76 = scmp.eq.s32.totalorder %s15, 0
      %p77 = por %p75, %p76
      %p78 = scmp.ne.s32.totalorder %s70, %s72
      %p79 = scmp.eq.s32.totalorder %s20, 1
      %p80 = por %p78, %p79
      %p81 = scmp.ne.s32.totalorder %s72, %s73
      %p82 = scmp.eq.s32.totalorder %s20, 0
      %p83 = por %p81, %p82
      %p84 = scmp.ne.s32.totalorder %s72, %s73
      %p85 = scmp.eq.s32.totalorder %s21, 1
      %p86 = por %p84, %p85
      %p88 = scmp.ne.s32.totalorder %s73, %s87
      %p89 = scmp.eq.s32.totalorder %s21, 0
      %p90 = por %p88, %p89
      %s91 = ssub.s32 %s15, %s22
      %p92 = scmp.eq.s32.totalorder %s91, 0
      %s94 = sadd.s32 %s93, 1
      %s95 = scalar_select %p92, %s93, %s94
      %p98 = pneg %p92
      %p99 = scmp.eq.s32.totalorder %s15, 1
      %p100 = por %p98, %p99
      %p101 = scmp.ne.s32.totalorder %s93, %s96
      %p102 = scmp.eq.s32.totalorder %s15, 0
      %p103 = por %p101, %p102
      %p104 = scmp.ne.s32.totalorder %s93, %s96
      %p105 = scmp.eq.s32.totalorder %s20, 1
      %p106 = por %p104, %p105
      %p107 = scmp.ne.s32.totalorder %s96, %s97
      %p108 = scmp.eq.s32.totalorder %s20, 0
      %p109 = por %p107, %p108
      %p110 = scmp.ne.s32.totalorder %s96, %s97
      %p111 = scmp.eq.s32.totalorder %s21, 1
      %p112 = por %p110, %p111
      %p114 = scmp.ne.s32.totalorder %s97, %s113
      %p115 = scmp.eq.s32.totalorder %s21, 0
      %p116 = por %p114, %p115
      %p117 = scmp.le.s32.totalorder 1, %s15
      %p118 = scmp.lt.s32.totalorder %s15, 3
      %p119 = pnand %p117, %p118
      %p120 = pneg %p119
      // Predicated region
      $region9: #{tpu_custom_call.1} parent=5 // pred_check
        _
      $region10: #{tpu_custom_call.1} parent=5 // pred_check_branch
        %122 = sbr.rel (%p119) target = $region12
      $region11: #{tpu_custom_call.1} parent=5 // pred_region
        %s123 = ssub.s32 %s15, 1
        // Predicated region
        $region13: #{tpu_custom_call.1} parent=11 // pred_check
          %p124 = pneg %p62
        $region14: #{tpu_custom_call.1} parent=11 // pred_check_branch
          %126 = sbr.rel (%p124) target = $region16
        $region15: #{tpu_custom_call.1} parent=11 // pred_region
          _
        $region16: #{tpu_custom_call.1} parent=11 // pred_fallthru
          _
        // Predicated region
        $region17: #{tpu_custom_call.1} parent=11 // pred_check
          %p127 = pneg %p83
        $region18: #{tpu_custom_call.1} parent=11 // pred_check_branch
          %129 = sbr.rel (%p127) target = $region20
        $region19: #{tpu_custom_call.1} parent=11 // pred_region
          _
        $region20: #{tpu_custom_call.1} parent=11 // pred_fallthru
          _
      $region12: #{tpu_custom_call.1} parent=5 // pred_fallthru
        _
      %p130 = scmp.lt.s32.totalorder %s15, 2
      // Predicated region
      $region21: #{tpu_custom_call.1} parent=5 // pred_check
        %p131 = pneg %p130
      $region22: #{tpu_custom_call.1} parent=5 // pred_check_branch
        %133 = sbr.rel (%p131) target = $region24
      $region23: #{tpu_custom_call.1} parent=5 // pred_region
        // Predicated region
        $region25: #{tpu_custom_call.1} parent=23 // pred_check
          %p134 = pneg %p35
        $region26: #{tpu_custom_call.1} parent=23 // pred_check_branch
          %136 = sbr.rel (%p134) target = $region28
        $region27: #{tpu_custom_call.1} parent=23 // pred_region
          %s137 = sand.u32 %s25, 1
          %s138 = scalar_lea.sflag [#allocation3], %s137
          %s139 = sand.u32 %s25, 1
          %s140 = smul.addr %s139, 8
          %s141 = scalar_lea.vmem [#allocation2], %s140
          %s143 = ssub.s32 128, 128
          %144 = vsyncadd %s138, %s143
          %s145 = smul.addr %s15, 2
          %s146 = smul.addr %s145, 64
          %s147 = scalar_lea.hbm %s0, %s146
          %s149 = sshll.u32 %s141, 4
          %s150 = int_to_ptr.vmem [resolvable:$true] %s149
          %152 = dma.hbm_to_vmem [thread:$0]  %s147, 128, %s150, %s138
        $region28: #{tpu_custom_call.1} parent=23 // pred_fallthru
          _
      $region24: #{tpu_custom_call.1} parent=5 // pred_fallthru
        _
      %p153 = scmp.le.s32.totalorder 1, %s15
      %p154 = scmp.lt.s32.totalorder %s15, 3
      %p155 = pnand %p153, %p154
      %p156 = pneg %p155
      // Predicated region
      $region29: #{tpu_custom_call.1} parent=5 // pred_check
        _
      $region30: #{tpu_custom_call.1} parent=5 // pred_check_branch
        %158 = sbr.rel (%p155) target = $region32
      $region31: #{tpu_custom_call.1} parent=5 // pred_region
        %s159 = ssub.s32 %s15, 1
        %s160 = sand.u32 %s28, 1
        %s161 = scalar_lea.sflag [#allocation3], %s160
        %s162 = sand.u32 %s28, 1
        %s163 = smul.addr %s162, 8
        %s164 = scalar_lea.vmem [#allocation2], %s163
        // Predicated region
        $region33: #{tpu_custom_call.1} parent=31 // pred_check
          %p165 = pneg %p41
        $region34: #{tpu_custom_call.1} parent=31 // pred_check_branch
          %167 = sbr.rel (%p165) target = $region36
        $region35: #{tpu_custom_call.1} parent=31 // pred_region
          %168 = dma.done %s161, 128
        $region36: #{tpu_custom_call.1} parent=31 // pred_fallthru
          _
        %s169 = sand.u32 %s28, 1
        %s170 = scalar_lea.sflag [#allocation3], %s169
        %s171 = sand.u32 %s28, 1
        %s172 = smul.addr %s171, 8
        %s173 = scalar_lea.vmem [#allocation2], %s172
        %p174 = pneg %p41
        %p175 = pneg %p38
        %p176 = pneg %p62
        %p177 = pneg %p59
        %p178 = pneg %p83
        %p179 = pneg %p80
        %p180 = pneg %p109
        %p181 = pneg %p106
        %s182 = sand.u32 %s96, 1
        %s183 = scalar_lea.sflag [#allocation4], %s182
        %s184 = sand.u32 %s96, 1
        %s185 = smul.addr %s184, 16
        %s186 = scalar_lea.vmem [#allocation5], %s185
        %v187 = vld [vmem:[%s1] sm:$0xf]
        %v188 = vlaneseq
        %v189 = vand.u32 %v188, 127
        %v190 = vadd.s32 %v189, 128
        %vm191 = vcmp.lt.s32.totalorder %v189, 0
        %v192 = vsub.s32 0, %v189
        %v193 = vsel %vm191, %v192, %v189
        %v194 = vshrl.u32 %v193, 4
        %v195 = vand.u32 %v193, 15
        %v196 = vsub.s32 0, %v195
        %v197 = vsel %vm191, %v196, %v195
        %vm198 = vcmp.lt.s32.totalorder %v190, 0
        %v199 = vsub.s32 0, %v190
        %v200 = vsel %vm198, %v199, %v190
        %v201 = vshrl.u32 %v200, 4
        %v202 = vand.u32 %v200, 15
        %v203 = vsub.s32 0, %v202
        %v204 = vsel %vm198, %v203, %v202
        %vm205 = vcmp.ne.s32.totalorder %v197, 0
        %vm206 = vcmp.ne.s32.totalorder %v204, 0
        %vm207 = vcmp.lt.s32.totalorder %v197, 0
        %vm208 = vcmp.lt.s32.totalorder %v204, 0
        %vm209 = vmand %vm207, %vm205
        %vm210 = vmand %vm208, %vm206
        %v211 = vadd.s32 %v197, 16
        %v212 = vadd.s32 %v204, 16
        %v213 = vsel %vm209, %v211, %v197
        %v214 = vsel %vm210, %v212, %v204
        %v215 = vld [vmem:[%s164] sm:$0xff]
        %v217 = vcombine.high %v215, %v215
        %218 = vrot.lane.b32.xlu0 %v215, 17
        %v219 = vpop.permute.xlu0 %218
        %220 = vrot.lane.b32.xlu0 %v217, 17
        %v221 = vpop.permute.xlu0 %220
        %vm222 = vcmask 138240
        %v223 = vsel %vm222, %v219, %v221
        %v227 = vsel %vm222, 0.0, %v219
        %v228 = vsel %vm222, %v221, 0.0
        %v229 = vadd.s32 %v213, 4294967295
        %v230 = vadd.s32 %v214, 4294967295
        %vm231 = vcmp.ge.s32.totalorder %v229, 0
        %vm232 = vcmp.ge.s32.totalorder %v230, 0
        %vm233 = vcmp.lt.s32.totalorder %v229, 16
        %vm234 = vcmp.lt.s32.totalorder %v230, 16
        %vm235 = vmand %vm231, %vm233
        %vm236 = vmand %vm232, %vm234
        %v237 = vsel %vm235, 1, 0
        %v238 = vsel %vm236, 1, 0
        %vm239 = vcmp.eq.s32.totalorder %v237, 1
        %vm240 = vcmp.eq.s32.totalorder %v238, 1
        %v241 = vsel %vm239, %v227, 0.0
        %v242 = vsel %vm240, %v223, 0.0
        %244 = vset.pattern.permute.xlu0 0
        %245 = vperm.xlu0 %244, %v187
        %v246 = vpop.permute.xlu0 %245
        %v248 = vmul.f32 %v241, %v246
        %v249 = vmul.f32 %v242, %v246
        %v250 = vadd.f32 %v248, 0.0
        %v251 = vadd.f32 %v249, 0.0
        %252 = vset.pattern.permute.xlu0 1
        %253 = vperm.xlu0 %252, %v187
        %v254 = vpop.permute.xlu0 %253
        %v256 = vmul.f32 %v227, %v254
        %v257 = vmul.f32 %v223, %v254
        %v258 = vmul.f32 %v228, %v254
        %262 = vrot.lane.b32.xlu0 %v256, 127
        %v263 = vpop.permute.xlu0 %262
        %264 = vrot.lane.b32.xlu0 %v257, 127
        %v265 = vpop.permute.xlu0 %264
        %266 = vrot.lane.b32.xlu0 %v258, 127
        %v267 = vpop.permute.xlu0 %266
        %vm268 = vcmask 1039360
        %v269 = vsel %vm268, %v263, %v265
        %v270 = vsel %vm268, %v265, %v267
        %v273 = vadd.f32 %v250, %v269
        %v274 = vadd.f32 %v251, %v270
        %v275 = vadd.s32 %v213, 1
        %v276 = vadd.s32 %v214, 1
        %vm277 = vcmp.ge.s32.totalorder %v275, 0
        %vm278 = vcmp.ge.s32.totalorder %v276, 0
        %vm279 = vcmp.lt.s32.totalorder %v275, 16
        %vm280 = vcmp.lt.s32.totalorder %v276, 16
        %vm281 = vmand %vm277, %vm279
        %vm282 = vmand %vm278, %vm280
        %v283 = vsel %vm281, 1, 0
        %v284 = vsel %vm282, 1, 0
        %vm285 = vcmp.eq.s32.totalorder %v283, 1
        %vm286 = vcmp.eq.s32.totalorder %v284, 1
        %289 = vrot.lane.b32.xlu0 %v227, 126
        %v290 = vpop.permute.xlu0 %289
        %291 = vrot.lane.b32.xlu0 %v223, 126
        %v292 = vpop.permute.xlu0 %291
        %293 = vrot.lane.b32.xlu0 %v228, 126
        %v294 = vpop.permute.xlu0 %293
        %vm295 = vcmask 1031168
        %v296 = vsel %vm295, %v290, %v292
        %v297 = vsel %vm295, %v292, %v294
        %v300 = vsel %vm285, %v296, 0.0
        %v301 = vsel %vm286, %v297, 0.0
        %302 = vset.pattern.permute.xlu0 2
        %303 = vperm.xlu0 %302, %v187
        %v304 = vpop.permute.xlu0 %303
        %v306 = vmul.f32 %v300, %v304
        %v307 = vmul.f32 %v301, %v304
        %v308 = vadd.f32 %v273, %v306
        %v309 = vadd.f32 %v274, %v307
        %310 = vrot.lane.b32.xlu0 %v227, 112
        %v311 = vpop.permute.xlu0 %310
        %312 = vrot.lane.b32.xlu0 %v223, 112
        %v313 = vpop.permute.xlu0 %312
        %314 = vrot.lane.b32.xlu0 %v228, 112
        %v315 = vpop.permute.xlu0 %314
        %vm316 = vcmask 916480
        %v317 = vsel %vm316, %v311, %v313
        %v318 = vsel %vm316, %v313, %v315
        %v321 = vsel %vm239, %v317, 0.0
        %v322 = vsel %vm240, %v318, 0.0
        %323 = vset.pattern.permute.xlu0 3
        %324 = vperm.xlu0 %323, %v187
        %v325 = vpop.permute.xlu0 %324
        %v327 = vmul.f32 %v321, %v325
        %v328 = vmul.f32 %v322, %v325
        %v329 = vadd.f32 %v308, %v327
        %v330 = vadd.f32 %v309, %v328
        %331 = vset.pattern.permute.xlu0 4
        %332 = vperm.xlu0 %331, %v187
        %v333 = vpop.permute.xlu0 %332
        %v335 = vmul.f32 %v227, %v333
        %v336 = vmul.f32 %v223, %v333
        %v337 = vmul.f32 %v228, %v333
        %341 = vrot.lane.b32.xlu0 %v335, 111
        %v342 = vpop.permute.xlu0 %341
        %343 = vrot.lane.b32.xlu0 %v336, 111
        %v344 = vpop.permute.xlu0 %343
        %345 = vrot.lane.b32.xlu0 %v337, 111
        %v346 = vpop.permute.xlu0 %345
        %vm347 = vcmask 908288
        %v348 = vsel %vm347, %v342, %v344
        %v349 = vsel %vm347, %v344, %v346
        %v352 = vadd.f32 %v329, %v348
        %v353 = vadd.f32 %v330, %v349
        %354 = vrot.lane.b32.xlu0 %v227, 110
        %v355 = vpop.permute.xlu0 %354
        %356 = vrot.lane.b32.xlu0 %v223, 110
        %v357 = vpop.permute.xlu0 %356
        %358 = vrot.lane.b32.xlu0 %v228, 110
        %v359 = vpop.permute.xlu0 %358
        %vm360 = vcmask 900096
        %v361 = vsel %vm360, %v355, %v357
        %v362 = vsel %vm360, %v357, %v359
        %v365 = vsel %vm285, %v361, 0.0
        %v366 = vsel %vm286, %v362, 0.0
        %367 = vset.pattern.permute.xlu0 5
        %368 = vperm.xlu0 %367, %v187
        %v369 = vpop.permute.xlu0 %368
        %v371 = vmul.f32 %v365, %v369
        %v372 = vmul.f32 %v366, %v369
        %v373 = vadd.f32 %v352, %v371
        %v374 = vadd.f32 %v353, %v372
        %375 = vrot.lane.b32.xlu0 %v227, 96
        %v376 = vpop.permute.xlu0 %375
        %377 = vrot.lane.b32.xlu0 %v223, 96
        %v378 = vpop.permute.xlu0 %377
        %379 = vrot.lane.b32.xlu0 %v228, 96
        %v380 = vpop.permute.xlu0 %379
        %vm381 = vcmask 785408
        %v382 = vsel %vm381, %v376, %v378
        %v383 = vsel %vm381, %v378, %v380
        %v386 = vsel %vm239, %v382, 0.0
        %v387 = vsel %vm240, %v383, 0.0
        %388 = vset.pattern.permute.xlu0 6
        %389 = vperm.xlu0 %388, %v187
        %v390 = vpop.permute.xlu0 %389
        %v392 = vmul.f32 %v386, %v390
        %v393 = vmul.f32 %v387, %v390
        %v394 = vadd.f32 %v373, %v392
        %v395 = vadd.f32 %v374, %v393
        %396 = vset.pattern.permute.xlu0 7
        %397 = vperm.xlu0 %396, %v187
        %v398 = vpop.permute.xlu0 %397
        %v400 = vmul.f32 %v227, %v398
        %v401 = vmul.f32 %v223, %v398
        %v402 = vmul.f32 %v228, %v398
        %406 = vrot.lane.b32.xlu0 %v400, 95
        %v407 = vpop.permute.xlu0 %406
        %408 = vrot.lane.b32.xlu0 %v401, 95
        %v409 = vpop.permute.xlu0 %408
        %410 = vrot.lane.b32.xlu0 %v402, 95
        %v411 = vpop.permute.xlu0 %410
        %vm412 = vcmask 777216
        %v413 = vsel %vm412, %v407, %v409
        %v414 = vsel %vm412, %v409, %v411
        %v417 = vadd.f32 %v394, %v413
        %v418 = vadd.f32 %v395, %v414
        %419 = vrot.lane.b32.xlu0 %v227, 94
        %v420 = vpop.permute.xlu0 %419
        %421 = vrot.lane.b32.xlu0 %v223, 94
        %v422 = vpop.permute.xlu0 %421
        %423 = vrot.lane.b32.xlu0 %v228, 94
        %v424 = vpop.permute.xlu0 %423
        %vm425 = vcmask 769024
        %v426 = vsel %vm425, %v420, %v422
        %v427 = vsel %vm425, %v422, %v424
        %v430 = vsel %vm285, %v426, 0.0
        %v431 = vsel %vm286, %v427, 0.0
        %432 = vset.pattern.permute.xlu0 8
        %433 = vperm.xlu0 %432, %v187
        %v434 = vpop.permute.xlu0 %433
        %v436 = vmul.f32 %v430, %v434
        %v437 = vmul.f32 %v431, %v434
        %v438 = vadd.f32 %v417, %v436
        %v439 = vadd.f32 %v418, %v437
        %v440 = vld [vmem:[%s2] sm:$0xff]
        %vm441 = vcmask 31744
        %v443 = vsel %vm441, %v440, 0
        %vm445 = vcmask 1043456
        %v447 = vsel %vm445, %v438, 0
        %v450 = vsel %vm445, %v439, 0
        %452 = vmatprep.subr.mxu0 0.0
        %453 = vmatpush1.msra.mxu0 0.0
        %454 = vmatprep.subr.mxu0 0.0
        %455 = vmatpush1.msra.mxu0 0.0
        %456 = vmatprep.subr.mxu0 0.0
        %457 = vmatpush1.msra.mxu0 0.0
        %458 = vmatprep.subr.mxu0 0.0
        %459 = vmatpush1.msra.mxu0 0.0
        %460 = vmatprep.subr.mxu0 0.0
        %461 = vmatpush1.msra.mxu0 0.0
        %462 = vmatprep.subr.mxu0 0.0
        %463 = vmatpush1.msra.mxu0 0.0
        %464 = vmatprep.subr.mxu0 0.0
        %465 = vmatpush1.msra.mxu0 0.0
        %466 = vmatprep.subr.mxu0 0.0
        %467 = vmatpush1.msra.mxu0 0.0
        %468 = vmatprep.subr.mxu0 0.0
        %469 = vmatpush1.msra.mxu0 0.0
        %470 = vmatprep.subr.mxu0 0.0
        %471 = vmatpush1.msra.mxu0 0.0
        %472 = vmatprep.subr.mxu0 0.0
        %473 = vmatpush1.msra.mxu0 0.0
        %474 = vmatprep.subr.mxu0 0.0
        %475 = vmatpush1.msra.mxu0 0.0
        %476 = vmatprep.subr.mxu0 0.0
        %477 = vmatpush1.msra.mxu0 0.0
        %478 = vmatprep.subr.mxu0 0.0
        %479 = vmatpush1.msra.mxu0 0.0
        %480 = vmatprep.subr.mxu0 0.0
        %481 = vmatpush1.msra.mxu0 0.0
        %482 = vmatprep.subr.mxu0 %v450
        %483 = vmatpush1.msra.mxu0 %v447
        %484 = vmatprep.subr.mxu0 0.0
        %485 = vmatpush2.msra.mxu0 0.0
        %486 = vmatprep.subr.mxu0 0.0
        %487 = vmatpush2.msra.mxu0 0.0
        %488 = vmatprep.subr.mxu0 0.0
        %489 = vmatpush2.msra.mxu0 0.0
        %490 = vmatprep.subr.mxu0 0.0
        %491 = vmatpush2.msra.mxu0 0.0
        %492 = vmatprep.subr.mxu0 0.0
        %493 = vmatpush2.msra.mxu0 0.0
        %494 = vmatprep.subr.mxu0 0.0
        %495 = vmatpush2.msra.mxu0 0.0
        %496 = vmatprep.subr.mxu0 0.0
        %497 = vmatpush2.msra.mxu0 0.0
        %498 = vmatprep.subr.mxu0 0.0
        %499 = vmatpush2.msra.mxu0 0.0
        %500 = vmatprep.subr.mxu0 0.0
        %501 = vmatpush2.msra.mxu0 0.0
        %502 = vmatprep.subr.mxu0 0.0
        %503 = vmatpush2.msra.mxu0 0.0
        %504 = vmatprep.subr.mxu0 0.0
        %505 = vmatpush2.msra.mxu0 0.0
        %506 = vmatprep.subr.mxu0 0.0
        %507 = vmatpush2.msra.mxu0 0.0
        %508 = vmatprep.subr.mxu0 0.0
        %509 = vmatpush2.msra.mxu0 0.0
        %510 = vmatprep.subr.mxu0 0.0
        %511 = vmatpush2.msra.mxu0 0.0
        %512 = vmatprep.subr.mxu0 0.0
        %513 = vmatpush2.msra.mxu0 0.0
        %514 = vmatprep.subr.mxu0 0.0
        %515 = vmatpush2.msra.mxu0 0.0
        %516 = vmatprep.mubr.f32.mxu0 0.0
        %517 = vmatmul.mubr.f32.gmra.mxu0 %v443
        %v518 = vpop.f32.mrf.mxu0
        %v519 = vadd.f32 0.0, %v518
        %v520 = vpop.f32.mrf.mxu0
        %v521 = vadd.f32 0.0, %v520
        %522 = vdwg.mxu0
        %523 = vst [vmem:[%s186] sm:$0xff] %v519
        %524 = vst [vmem:[%s186 + $0x8] sm:$0xff] %v521
        %s525 = sand.u32 %s96, 1
        %s526 = scalar_lea.sflag [#allocation4], %s525
        %s527 = sand.u32 %s96, 1
        %s528 = smul.addr %s527, 16
        %s529 = scalar_lea.vmem [#allocation5], %s528
        // Predicated region
        $region37: #{tpu_custom_call.1} parent=31 // pred_check
          %p530 = pneg %p106
        $region38: #{tpu_custom_call.1} parent=31 // pred_check_branch
          %532 = sbr.rel (%p530) target = $region40
        $region39: #{tpu_custom_call.1} parent=31 // pred_region
          %s534 = ssub.s32 256, 256
          %535 = vsyncadd %s526, %s534
          %s536 = smul.addr %s20, 2
          %s537 = smul.addr %s536, 128
          %s538 = scalar_lea.hbm %s3, %s537
          %s540 = sshll.u32 %s529, 4
          %s541 = int_to_ptr.vmem [resolvable:$true] %s540
          %543 = dma.vmem_to_hbm [thread:$0]  %s541, 256, %s538, %s526
        $region40: #{tpu_custom_call.1} parent=31 // pred_fallthru
          _
      $region32: #{tpu_custom_call.1} parent=5 // pred_fallthru
        _
      %p544 = scmp.le.s32.totalorder 2, %s15
      // Predicated region
      $region41: #{tpu_custom_call.1} parent=5 // pred_check
        %p545 = pneg %p544
      $region42: #{tpu_custom_call.1} parent=5 // pred_check_branch
        %547 = sbr.rel (%p545) target = $region44
      $region43: #{tpu_custom_call.1} parent=5 // pred_region
        %s548 = ssub.s32 %s15, 2
        // Predicated region
        $region45: #{tpu_custom_call.1} parent=43 // pred_check
          %p549 = pneg %p112
        $region46: #{tpu_custom_call.1} parent=43 // pred_check_branch
          %551 = sbr.rel (%p549) target = $region48
        $region47: #{tpu_custom_call.1} parent=43 // pred_region
          %s552 = sand.u32 %s97, 1
          %s553 = scalar_lea.sflag [#allocation4], %s552
          %s554 = sand.u32 %s97, 1
          %s555 = smul.addr %s554, 16
          %s556 = scalar_lea.vmem [#allocation5], %s555
          %557 = dma.done %s553, 256
        $region48: #{tpu_custom_call.1} parent=43 // pred_fallthru
          _
      $region44: #{tpu_custom_call.1} parent=5 // pred_fallthru
        _
    $region6: #{tpu_custom_call.1} parent=1 // loop_footer
      %s19 = sadd.s32 1, %s15
    $region7: #{tpu_custom_call.1} parent=1 // loop_footer_branch
      %14 = sbr.rel target = $region3
    $region8: #{tpu_custom_call.1} parent=1 // loop_exit
      _
    %558 = vsyncpa [#allocation3], 1
    %s559 = scalar_lea.sflag [#allocation3], 1
    %560 = vsyncpa %s559, 1
    %561 = vsyncpa [#allocation4], 1
    %s562 = scalar_lea.sflag [#allocation4], 1
    %563 = vsyncpa %s562, 1

</llo_original>
